<compile_context>
chip_gen: v7x
topology: tpu7x:2x2x1
jax: 0.10.0
libtpu: 0.0.40
codegen_flags: <defaults>
</compile_context>

<pallas_src>
import functools

import jax
import jax.numpy as jnp
import numpy as np
from jax.experimental import pallas as pl
from jax.experimental.pallas import tpu as pltpu

CONST_SCALE = 0.18215

_LANES = 128
_ROW_CAP = 1024          # 512 KiB f32 blocks; fits every generation incl. v7x VMEM


# ----------------------------- Pallas kernels ------------------------------

def affine_kernel(x_ref, o_ref, *, scale, shift, clamp_lo=None, clamp_hi=None):
    """y = scale * x + shift, optionally clamped (latents_to_img pre-scale,
    decode post-process)."""
    y = x_ref[...].astype(jnp.float32) * scale + shift
    if clamp_lo is not None:
        y = jnp.clip(y, clamp_lo, clamp_hi)
    o_ref[...] = y.astype(o_ref.dtype)


def affine2_kernel(x_ref, y_ref, ox_ref, oy_ref, *, scale, shift):
    """Same affine applied to two identically shaped tensors in one launch
    (imgs_to_latent pre-scale for image and image_cond)."""
    ox_ref[...] = (x_ref[...].astype(jnp.float32) * scale + shift).astype(ox_ref.dtype)
    oy_ref[...] = (y_ref[...].astype(jnp.float32) * scale + shift).astype(oy_ref.dtype)


def scale_add_noise_kernel(coef_ref, lat_ref, noise_ref, o_ref):
    """Fused (posterior.sample() * CONST_SCALE) and scheduler.add_noise.
    coef_ref (SMEM, (2,)): [sqrt_alpha*CONST_SCALE, sqrt_one_minus_alpha]."""
    a = coef_ref[0]
    b = coef_ref[1]
    o_ref[...] = (a * lat_ref[...].astype(jnp.float32)
                  + b * noise_ref[...].astype(jnp.float32)).astype(o_ref.dtype)


def cfg_kernel(text_ref, image_ref, uncond_ref, o_ref, *, gs, igs):
    """noise_pred = uncond + gs*(text - image) + igs*(image - uncond)."""
    t = text_ref[...].astype(jnp.float32)
    im = image_ref[...].astype(jnp.float32)
    u = uncond_ref[...].astype(jnp.float32)
    o_ref[...] = (u + gs * (t - im) + igs * (im - u)).astype(o_ref.dtype)


def build_unet_input_kernel(lat_ref, mode_ref, o_ref):
    """Assemble one (replica r, batch b) slice of the UNet input:
    channels 0:4 = latents[b]; channels 4:8 = image latents mode (r<2) or zeros (r==2)."""
    r = pl.program_id(0)
    o_ref[0, 0, 0] = lat_ref[0]

    @pl.when(r < 2)
    def _():
        o_ref[0, 0, 1] = mode_ref[0]

    @pl.when(r == 2)
    def _():
        o_ref[0, 0, 1] = jnp.zeros_like(mode_ref[0])


def depth_minmax_kernel(d_ref, minmax_ref, vmin_sc, vmax_sc, *, total_rows):
    """Pass 1 of get_depth_tensor: masked per-lane min/max accumulated over the grid
    in VMEM scratch; final cross-lane reduce to two SMEM scalars on the last step."""
    i = pl.program_id(0)
    rb = d_ref.shape[0]
    d = d_ref[...].astype(jnp.float32)
    row = jax.lax.broadcasted_iota(jnp.int32, d.shape, 0) + i * rb
    valid = (d != 0.0) & (row < total_rows)          # no_depth == 0.0; mask OOB rows
    inf = jnp.float32(jnp.inf)
    pmin = jnp.min(jnp.where(valid, d, inf), axis=0, keepdims=True)     # (1, W)
    pmax = jnp.max(jnp.where(valid, d, -inf), axis=0, keepdims=True)    # (1, W)

    @pl.when(i == 0)
    def _():
        vmin_sc[...] = pmin
        vmax_sc[...] = pmax

    @pl.when(i > 0)
    def _():
        vmin_sc[...] = jnp.minimum(vmin_sc[...], pmin)
        vmax_sc[...] = jnp.maximum(vmax_sc[...], pmax)

    @pl.when(i == pl.num_programs(0) - 1)
    def _():
        minmax_ref[0] = jnp.min(vmin_sc[...])
        minmax_ref[1] = jnp.max(vmax_sc[...])


def depth_norm_kernel(minmax_ref, d_ref, o_ref):
    """Pass 2 of get_depth_tensor: remap valid depth to [50,255], fill holes with 10,
    /255, and write the 3x batch-replicated, 3-channel output directly
    (== torch.cat([depth_tensor.repeat(1,3,1,1)]*3))."""
    dmin = minmax_ref[0]
    dmax = minmax_ref[1]
    # Guard dmax==dmin / all-holes (torch would produce NaN/Inf from 0/0 here).
    denom = jnp.maximum(dmax - dmin, jnp.float32(1e-12))
    d = d_ref[0].astype(jnp.float32)                   # (hb, W)
    mask = d != 0.0
    val = (dmax - d) / denom * (255.0 - 50.0) + 50.0
    rel = (jnp.where(mask, val, 10.0) * jnp.float32(1.0 / 255.0)).astype(o_ref.dtype)
    for r in range(3):        # CFG replicas
        for c in range(3):    # RGB channels
            o_ref[r, 0, c, :, :] = rel


# ------------------------------ wrappers -----------------------------------

def _elementwise_call(kernel, arrays, out_dtypes, scalar_inputs=()):
    """Run an elementwise kernel over lane-dense (rows, 128) slabs.

    arrays:        identically shaped tensors, tiled as VMEM blocks.
    scalar_inputs: small 1-D arrays passed whole in SMEM (e.g. timestep coefs).
    out_dtypes:    dtype or tuple of dtypes -> one output per dtype (same shape).
    """
    shape = arrays[0].shape
    n = arrays[0].size
    pad = (-n) % _LANES                    # pad only to a lane multiple (rare)
    flats = []
    for a in arrays:
        f = a.reshape(-1)
        if pad:
            f = jnp.pad(f, (0, pad))
        flats.append(f.reshape((n + pad) // _LANES, _LANES))
    rows = flats[0].shape[0]
    rb = rows if rows <= _ROW_CAP else _ROW_CAP      # cdiv grid, partial last block OK
    vspec = pl.BlockSpec((rb, _LANES), lambda i: (i, 0))

    single = not isinstance(out_dtypes, (tuple, list))
    odts = (out_dtypes,) if single else tuple(out_dtypes)
    out_shapes = tuple(jax.ShapeDtypeStruct((rows, _LANES), dt) for dt in odts)

    outs = pl.pallas_call(
        kernel,
        out_shape=out_shapes[0] if single else out_shapes,
        grid=(pl.cdiv(rows, rb),),
        in_specs=[pl.BlockSpec(memory_space=pltpu.MemorySpace.SMEM)] * len(scalar_inputs)
                 + [vspec] * len(flats),
        out_specs=vspec if single else tuple(vspec for _ in odts),
        compiler_params=pltpu.CompilerParams(dimension_semantics=("parallel",)),
    )(*scalar_inputs, *flats)

    outs = (outs,) if single else outs
    res = []
    for o in outs:
        o = o.reshape(-1)
        if pad:
            o = o[:n]
        res.append(o.reshape(shape))
    return res[0] if single else tuple(res)


def affine(x, scale, shift, clamp_lo=None, clamp_hi=None):
    k = functools.partial(affine_kernel, scale=scale, shift=shift,
                          clamp_lo=clamp_lo, clamp_hi=clamp_hi)
    return _elementwise_call(k, [x], x.dtype)


def imgs_to_latent_prescale_pair(imgs_a, imgs_b):
    """imgs = 2 * imgs - 1 for both image and image_cond in a single launch.
    The VAE encode that follows is a pretrained network."""
    k = functools.partial(affine2_kernel, scale=2.0, shift=-1.0)
    return _elementwise_call(k, [imgs_a, imgs_b], (imgs_a.dtype, imgs_b.dtype))


def scale_and_add_noise(latent_sample, noise, sqrt_alpha_prod, sqrt_one_minus_alpha_prod):
    """latents = sample*CONST_SCALE ; latents = add_noise(latents, noise, t) — fused.
    Timestep coefficients are runtime SMEM scalars -> one compilation for all T."""
    coef = jnp.asarray([sqrt_alpha_prod * CONST_SCALE, sqrt_one_minus_alpha_prod],
                       dtype=jnp.float32)
    return _elementwise_call(scale_add_noise_kernel, [latent_sample, noise],
                             latent_sample.dtype, scalar_inputs=(coef,))


def cfg_combine(noise_pred, guidance_scale=7.5, image_guidance_scale=1.5):
    """torch: text,image,uncond = noise_pred.chunk(3); combine.  Chunk selection is
    done with pl.Squeezed BlockSpecs on a (3, rows, 128) view (no jnp.split copy)."""
    n3 = noise_pred.shape[0]
    assert n3 % 3 == 0
    chunk_shape = (n3 // 3,) + noise_pred.shape[1:]
    chunk = int(np.prod(chunk_shape))
    x3 = noise_pred.reshape(3, chunk)
    pad = (-chunk) % _LANES
    if pad:
        x3 = jnp.pad(x3, ((0, 0), (0, pad)))
    rows = (chunk + pad) // _LANES
    x3 = x3.reshape(3, rows, _LANES)
    rb = rows if rows <= _ROW_CAP else _ROW_CAP
    k = functools.partial(cfg_kernel, gs=guidance_scale, igs=image_guidance_scale)

    def chunk_spec(c):
        return pl.BlockSpec((pl.Squeezed(), rb, _LANES), lambda i: (c, i, 0))

    out = pl.pallas_call(
        k,
        out_shape=jax.ShapeDtypeStruct((rows, _LANES), noise_pred.dtype),
        grid=(pl.cdiv(rows, rb),),
        in_specs=[chunk_spec(0), chunk_spec(1), chunk_spec(2)],
        out_specs=pl.BlockSpec((rb, _LANES), lambda i: (i, 0)),
        compiler_params=pltpu.CompilerParams(dimension_semantics=("parallel",)),
    )(x3, x3, x3)
    out = out.reshape(-1)
    if pad:
        out = out[:chunk]
    return out.reshape(chunk_shape)


def build_latent_model_input(latents, image_latents_mode):
    """Builds torch.cat([torch.cat([latents]*3), cat([mode, mode, zeros])], dim=1)
    — the (3*BS, 8, LH, LW) UNet input — in one kernel, no wrapper concats.
    The ControlNet input (torch.cat([latents]*3)) is its first 4 channels."""
    bs, c, lh, lw = latents.shape
    per = c * lh * lw
    if per % _LANES != 0:
        # TODO(synk): non-lane-aligned latent sizes fall back to XLA concat.
        li = jnp.concatenate([latents] * 3, axis=0)
        cond = jnp.concatenate([image_latents_mode, image_latents_mode,
                                jnp.zeros_like(image_latents_mode)], axis=0)
        return jnp.concatenate([li, cond], axis=1)
    rpi = per // _LANES
    lat3 = latents.reshape(bs, rpi, _LANES)
    mode3 = image_latents_mode.reshape(bs, rpi, _LANES)
    out = pl.pallas_call(
        build_unet_input_kernel,
        out_shape=jax.ShapeDtypeStruct((3, bs, 2, rpi, _LANES), latents.dtype),
        grid=(3, bs),
        in_specs=[pl.BlockSpec((1, rpi, _LANES), lambda r, b: (b, 0, 0)),
                  pl.BlockSpec((1, rpi, _LANES), lambda r, b: (b, 0, 0))],
        out_specs=pl.BlockSpec((1, 1, 2, rpi, _LANES), lambda r, b: (r, b, 0, 0, 0)),
        compiler_params=pltpu.CompilerParams(
            dimension_semantics=("parallel", "parallel")),
    )(lat3, mode3)
    # contiguous reshape: (3, BS, 2, 4*LH*LW/128, 128) -> (3*BS, 8, LH, LW)
    return out.reshape(3 * bs, 2 * c, lh, lw)


def get_depth_tensor(depth, render_size):
    """Masked global min/max remap + hole fill + /255.  Returns both the
    (BS,3,H,W) depth tensor and the 3x-replicated (3*BS,3,H,W) ControlNet
    conditioning, the latter written directly by the kernel (no wrapper concat)."""
    bs, h, w = depth.shape
    d32 = depth.astype(jnp.float32)
    rows = bs * h
    d2 = d32.reshape(rows, w)
    rb = rows if rows <= 512 else 512

    # pass 1: tiled masked min/max reduction, finalized to two SMEM scalars
    minmax = pl.pallas_call(
        functools.partial(depth_minmax_kernel, total_rows=rows),
        out_shape=jax.ShapeDtypeStruct((2,), jnp.float32),
        grid=(pl.cdiv(rows, rb),),
        in_specs=[pl.BlockSpec((rb, w), lambda i: (i, 0))],
        out_specs=pl.BlockSpec(memory_space=pltpu.MemorySpace.SMEM),
        scratch_shapes=[pltpu.VMEM((1, w), jnp.float32),
                        pltpu.VMEM((1, w), jnp.float32)],
        compiler_params=pltpu.CompilerParams(dimension_semantics=("arbitrary",)),
    )(d2)

    # pass 2: tiled remap, writing all 3 replicas x 3 channels from the kernel
    hb = h if h <= 256 else 256
    out = pl.pallas_call(
        depth_norm_kernel,
        out_shape=jax.ShapeDtypeStruct((3, bs, 3, h, w), jnp.float32),
        grid=(bs, pl.cdiv(h, hb)),
        in_specs=[pl.BlockSpec(memory_space=pltpu.MemorySpace.SMEM),
                  pl.BlockSpec((1, hb, w), lambda b, i: (b, i, 0))],
        out_specs=pl.BlockSpec((3, 1, 3, hb, w), lambda b, i: (0, b, 0, i, 0)),
        compiler_params=pltpu.CompilerParams(
            dimension_semantics=("parallel", "parallel")),
    )(minmax, d32)

    assert (h, w) == (render_size, render_size)
    # TODO(synk): general F.interpolate(..., mode="bilinear", align_corners=False)
    # resize not implemented; it is an exact identity here because H == W == render_size.
    depth_tensor = out[0]                                   # (BS, 3, H, W)
    controlnet_cond_input = out.reshape(3 * bs, 3, h, w)    # torch.cat([depth_tensor]*3)
    return depth_tensor, controlnet_cond_input


# --------------------- module-method analogues (glue) ----------------------

def latents_to_img_prescale(latents):
    # latents = 1 / CONST_SCALE * latents
    return affine(latents, 1.0 / CONST_SCALE, 0.0)


def decode_postprocess(decoded):
    # imgs = (imgs / 2 + 0.5).clamp(0, 1)
    return affine(decoded, 0.5, 0.5, clamp_lo=0.0, clamp_hi=1.0)


# ---------------------------------- main ------------------------------------

if __name__ == "__main__":
    key = jax.random.PRNGKey(0)
    BS, C, H, W = 2, 3, 128, 128          # images at render_size
    LH = LW = 16                          # latent spatial (VAE /8)
    render_size = H

    ks = jax.random.split(key, 8)
    image = jax.random.uniform(ks[0], (BS, C, H, W), jnp.float32)
    image_cond = jax.random.uniform(ks[1], (BS, C, H, W), jnp.float32)
    depth = jax.random.uniform(ks[2], (BS, H, W), jnp.float32, 0.5, 5.0)
    hole = jax.random.bernoulli(ks[3], 0.1, (BS, H, W))
    depth = jnp.where(hole, 0.0, depth)   # no_depth == 0 holes

    latent_sample = jax.random.normal(ks[4], (BS, 4, LH, LW), jnp.float32)
    image_latents_mode = jax.random.normal(ks[5], (BS, 4, LH, LW), jnp.float32)
    noise = jax.random.normal(ks[6], (BS, 4, LH, LW), jnp.float32)
    # stand-in for the (pretrained) UNet output at one diffusion step
    noise_pred_raw = jax.random.normal(ks[7], (3 * BS, 4, LH, LW), jnp.float32)
    # stand-in for the (pretrained) VAE decoder output
    decoded_sample = jax.random.normal(jax.random.PRNGKey(1), (BS, C, H, W), jnp.float32)

    # ----- edit_image_depth numeric path -----
    depth_tensor, controlnet_cond_input = get_depth_tensor(depth, render_size)

    num_train_timesteps = 1000
    min_step, max_step = int(1000 * 0.7), int(1000 * 0.98)
    T = int(jax.random.randint(jax.random.PRNGKey(2), (), min_step, max_step + 1))
    betas = np.linspace(1e-4, 2e-2, num_train_timesteps, dtype=np.float64)
    alphas_cumprod = np.cumprod(1.0 - betas)
    sqrt_a = float(np.sqrt(alphas_cumprod[T]))
    sqrt_1ma = float(np.sqrt(1.0 - alphas_cumprod[T]))
    # TODO(synk): exact DDIMScheduler.set_timesteps / timesteps[0] spacing not reproduced.

    # imgs_to_latent / prepare_image_latents pre-scale (2*x - 1), one fused launch
    _scaled_imgs, _scaled_cond = imgs_to_latent_prescale_pair(image, image_cond)
    # TODO(synk): auto_encoder.encode(...).latent_dist (pretrained VAE) not translatable.

    # fused: latents = sample * CONST_SCALE ; latents = scheduler.add_noise(latents, noise, t0)
    latents = scale_and_add_noise(latent_sample, noise, sqrt_a, sqrt_1ma)

    # one denoising iteration's glue: UNet input assembled in-kernel
    latent_model_input = build_latent_model_input(latents, image_latents_mode)
    # ControlNet consumes latent_model_input[:, :4] (== torch.cat([latents]*3)).
    # TODO(synk): ControlNetModel + UNet2DConditionModel forward (pretrained) not translatable.
    noise_pred = cfg_combine(noise_pred_raw, 7.5, 1.5)
    # TODO(synk): DDIMScheduler.step (prev_sample update) not translated.

    # latents_to_img
    _scaled_latents = latents_to_img_prescale(latents)
    # TODO(synk): auto_encoder.decode (pretrained VAE) not translatable.
    imgs = decode_postprocess(decoded_sample)

    # ----- correctness checks against pure-NumPy references -----
    d = np.asarray(depth)
    m = d != 0.0
    dmin, dmax = d[m].min(), d[m].max()
    val = (dmax - d) / (dmax - dmin) * 205.0 + 50.0
    rel = np.where(m, val, 10.0) / 255.0
    ref_depth = np.broadcast_to(rel[:, None, :, :], (BS, 3, H, W))
    np.testing.assert_allclose(np.asarray(depth_tensor), ref_depth, rtol=1e-5, atol=1e-5)
    ref_cond = np.concatenate([ref_depth] * 3, axis=0)
    np.testing.assert_allclose(np.asarray(controlnet_cond_input), ref_cond,
                               rtol=1e-5, atol=1e-5)

    t_, i_, u_ = np.split(np.asarray(noise_pred_raw), 3, axis=0)
    ref_cfg = u_ + 7.5 * (t_ - i_) + 1.5 * (i_ - u_)
    np.testing.assert_allclose(np.asarray(noise_pred), ref_cfg, rtol=1e-5, atol=1e-5)

    ref_lat = sqrt_a * (np.asarray(latent_sample) * CONST_SCALE) + sqrt_1ma * np.asarray(noise)
    np.testing.assert_allclose(np.asarray(latents), ref_lat, rtol=1e-5, atol=1e-5)

    lat3 = np.concatenate([ref_lat] * 3, axis=0)
    mode_np = np.asarray(image_latents_mode)
    cond_lat = np.concatenate([mode_np, mode_np, np.zeros_like(mode_np)], axis=0)
    ref_unet_in = np.concatenate([lat3, cond_lat], axis=1)
    np.testing.assert_allclose(np.asarray(latent_model_input), ref_unet_in,
                               rtol=1e-5, atol=1e-5)

    np.testing.assert_allclose(np.asarray(_scaled_imgs), 2.0 * np.asarray(image) - 1.0,
                               rtol=1e-5, atol=1e-5)
    np.testing.assert_allclose(np.asarray(_scaled_cond), 2.0 * np.asarray(image_cond) - 1.0,
                               rtol=1e-5, atol=1e-5)

    ref_imgs = np.clip(np.asarray(decoded_sample) / 2.0 + 0.5, 0.0, 1.0)
    np.testing.assert_allclose(np.asarray(imgs), ref_imgs, rtol=1e-5, atol=1e-5)

    jax.block_until_ready((depth_tensor, controlnet_cond_input, latent_model_input,
                           noise_pred, _scaled_latents, _scaled_imgs, imgs))
    print("KERNEL_OK")
</pallas_src>

<mosaic_0001>
module attributes {stable_mosaic.version = 11 : i64} {
  func.func @depth_minmax_kernel(%arg0: i32, %arg1: memref<256x128xf32, #tpu.memory_space<vmem>>, %arg2: memref<2xf32, #tpu.memory_space<smem>>, %arg3: memref<1x128xf32, #tpu.memory_space<vmem>>, %arg4: memref<1x128xf32, #tpu.memory_space<vmem>>) attributes {dimension_semantics = [#tpu.dimension_semantics<arbitrary>], iteration_bounds = array<i64: 1>, scalar_prefetch = 0 : i64, scratch_operands = 2 : i64, tpu.core_type = #tpu.core_type<tc>, window_params = [{transform_indices = @transform_0, window_bounds = array<i64: 256, 128>}, {transform_indices = @transform_1, window_bounds = array<i64: 2>}]} {
    %c0 = arith.constant 0 : index
    %c0_0 = arith.constant 0 : index
    %0 = vector.load %arg1[%c0, %c0_0] : memref<256x128xf32, #tpu.memory_space<vmem>>, vector<256x128xf32>
    %1 = tpu.iota {dimensions = array<i32: 0>} : vector<256x128xi32>
    %c256_i32 = arith.constant 256 : i32
    %2 = arith.muli %arg0, %c256_i32 : i32
    %3 = vector.broadcast %2 : i32 to vector<256x128xi32>
    %4 = arith.addi %1, %3 : vector<256x128xi32>
    %cst = arith.constant 0.000000e+00 : f32
    %5 = vector.broadcast %cst : f32 to vector<256x128xf32>
    %6 = arith.cmpf one, %0, %5 : vector<256x128xf32>
    %c256_i32_1 = arith.constant 256 : i32
    %7 = vector.broadcast %c256_i32_1 : i32 to vector<256x128xi32>
    %8 = arith.cmpi slt, %4, %7 : vector<256x128xi32>
    %9 = arith.andi %6, %8 : vector<256x128xi1>
    %cst_2 = arith.constant 0x7F800000 : f32
    %10 = vector.broadcast %cst_2 : f32 to vector<256x128xf32>
    %11 = arith.select %9, %0, %10 : vector<256x128xi1>, vector<256x128xf32>
    %cst_3 = arith.constant dense<0x7F800000> : vector<128xf32>
    %12 = vector.multi_reduction <minimumf>, %11, %cst_3 [0] : vector<256x128xf32> to vector<128xf32>
    %13 = vector.shape_cast %12 : vector<128xf32> to vector<1x128xf32>
    %cst_4 = arith.constant 0.000000e+00 : f32
    %cst_5 = arith.constant 0x7F800000 : f32
    %14 = arith.subf %cst_4, %cst_5 : f32
    %15 = vector.broadcast %14 : f32 to vector<256x128xf32>
    %16 = arith.select %9, %0, %15 : vector<256x128xi1>, vector<256x128xf32>
    %cst_6 = arith.constant dense<0xFF800000> : vector<128xf32>
    %17 = vector.multi_reduction <maximumf>, %16, %cst_6 [0] : vector<256x128xf32> to vector<128xf32>
    %18 = vector.shape_cast %17 : vector<128xf32> to vector<1x128xf32>
    %c0_i32 = arith.constant 0 : i32
    %19 = arith.cmpi eq, %arg0, %c0_i32 : i32
    %20 = arith.extui %19 : i1 to i32
    %c0_i32_7 = arith.constant 0 : i32
    %21 = arith.cmpi ne, %20, %c0_i32_7 : i32
    scf.if %21 {
      %c0_12 = arith.constant 0 : index
      %c0_13 = arith.constant 0 : index
      %28 = vector.load %arg3[%c0_12, %c0_13] : memref<1x128xf32, #tpu.memory_space<vmem>>, vector<1x128xf32>
      tpu.vector_store %arg3[%c0_12, %c0_13], %13 {strides = array<i32>} : memref<1x128xf32, #tpu.memory_space<vmem>>, vector<1x128xf32>,
      %c0_14 = arith.constant 0 : index
      %c0_15 = arith.constant 0 : index
      %29 = vector.load %arg4[%c0_14, %c0_15] : memref<1x128xf32, #tpu.memory_space<vmem>>, vector<1x128xf32>
      tpu.vector_store %arg4[%c0_14, %c0_15], %18 {strides = array<i32>} : memref<1x128xf32, #tpu.memory_space<vmem>>, vector<1x128xf32>,
    } else {
    }
    %c0_i32_8 = arith.constant 0 : i32
    %22 = arith.cmpi sgt, %arg0, %c0_i32_8 : i32
    %23 = arith.extui %22 : i1 to i32
    %c0_i32_9 = arith.constant 0 : i32
    %24 = arith.cmpi ne, %23, %c0_i32_9 : i32
    scf.if %24 {
      %c0_12 = arith.constant 0 : index
      %c0_13 = arith.constant 0 : index
      %28 = vector.load %arg3[%c0_12, %c0_13] : memref<1x128xf32, #tpu.memory_space<vmem>>, vector<1x128xf32>
      %29 = arith.minimumf %28, %13 : vector<1x128xf32>
      %c0_14 = arith.constant 0 : index
      %c0_15 = arith.constant 0 : index
      %30 = vector.load %arg3[%c0_14, %c0_15] : memref<1x128xf32, #tpu.memory_space<vmem>>, vector<1x128xf32>
      tpu.vector_store %arg3[%c0_14, %c0_15], %29 {strides = array<i32>} : memref<1x128xf32, #tpu.memory_space<vmem>>, vector<1x128xf32>,
      %c0_16 = arith.constant 0 : index
      %c0_17 = arith.constant 0 : index
      %31 = vector.load %arg4[%c0_16, %c0_17] : memref<1x128xf32, #tpu.memory_space<vmem>>, vector<1x128xf32>
      %32 = arith.maximumf %31, %18 : vector<1x128xf32>
      %c0_18 = arith.constant 0 : index
      %c0_19 = arith.constant 0 : index
      %33 = vector.load %arg4[%c0_18, %c0_19] : memref<1x128xf32, #tpu.memory_space<vmem>>, vector<1x128xf32>
      tpu.vector_store %arg4[%c0_18, %c0_19], %32 {strides = array<i32>} : memref<1x128xf32, #tpu.memory_space<vmem>>, vector<1x128xf32>,
    } else {
    }
    %c0_i32_10 = arith.constant 0 : i32
    %25 = arith.cmpi eq, %arg0, %c0_i32_10 : i32
    %26 = arith.extui %25 : i1 to i32
    %c0_i32_11 = arith.constant 0 : i32
    %27 = arith.cmpi ne, %26, %c0_i32_11 : i32
    scf.if %27 {
      %c0_12 = arith.constant 0 : index
      %c0_13 = arith.constant 0 : index
      %28 = vector.load %arg3[%c0_12, %c0_13] : memref<1x128xf32, #tpu.memory_space<vmem>>, vector<1x128xf32>
      %29 = vector.shape_cast %28 : vector<1x128xf32> to vector<1x1x128xf32>
      %cst_14 = arith.constant dense<0x7F800000> : vector<1xf32>
      %30 = vector.multi_reduction <minimumf>, %29, %cst_14 [1, 2] : vector<1x1x128xf32> to vector<1xf32>
      %31 = vector.shape_cast %30 : vector<1xf32> to vector<1x1x1xf32>
      %32 = vector.extract %31[0, 0, 0] : f32 from vector<1x1x1xf32>
      %c0_15 = arith.constant 0 : index
      %33 = memref.load %arg2[%c0_15] : memref<2xf32, #tpu.memory_space<smem>>
      memref.store %32, %arg2[%c0_15] : memref<2xf32, #tpu.memory_space<smem>>
      %c0_16 = arith.constant 0 : index
      %c0_17 = arith.constant 0 : index
      %34 = vector.load %arg4[%c0_16, %c0_17] : memref<1x128xf32, #tpu.memory_space<vmem>>, vector<1x128xf32>
      %35 = vector.shape_cast %34 : vector<1x128xf32> to vector<1x1x128xf32>
      %cst_18 = arith.constant dense<0xFF800000> : vector<1xf32>
      %36 = vector.multi_reduction <maximumf>, %35, %cst_18 [1, 2] : vector<1x1x128xf32> to vector<1xf32>
      %37 = vector.shape_cast %36 : vector<1xf32> to vector<1x1x1xf32>
      %38 = vector.extract %37[0, 0, 0] : f32 from vector<1x1x1xf32>
      %c1 = arith.constant 1 : index
      %39 = memref.load %arg2[%c1] : memref<2xf32, #tpu.memory_space<smem>>
      memref.store %38, %arg2[%c1] : memref<2xf32, #tpu.memory_space<smem>>
    } else {
    }
    return
  }
  func.func @transform_0(%arg0: i32) -> (i32, i32) {
    %c0_i32 = arith.constant 0 : i32
    %c0_i32_0 = arith.constant 0 : i32
    return %arg0, %c0_i32 : i32, i32
  }
  func.func @transform_1(%arg0: i32) -> i32 {
    %c0_i32 = arith.constant 0 : i32
    %c0_i32_0 = arith.constant 0 : i32
    return %c0_i32 : i32
  }
}

</mosaic_0001>

<llo_original>
// kernel: tpu_custom_call.1
$region0: #{tpu_custom_call.1}
  #allocation0 [shape = 'u32[]', space=smem, size = 0x4, offset = 0x4, fixed_abs, tag = 'smem constant byte address 0x4 - core index']
  #allocation1 [shape = 'u32[144,128]{1,0:T(1,128)}', space=vmem, size = 0x12000, scoped, tag = 'internal scratch']
  #allocation2 [shape = 'f32[1,128]{1,0:T(1,128)}', space=vmem, size = 0x200, scoped, tag = 'scratch operand']
  #allocation3 [shape = 'f32[1,128]{1,0:T(1,128)}', space=vmem, size = 0x200, scoped, tag = 'scratch operand']
  %s0 = inlined_call_operand.hbm [shape: f32[256,128], index: 0, kind: input, shape index: {}]
  %s1 = inlined_call_operand.hbm [shape: f32[2], index: 1, kind: output, shape index: {}]
  %s2 = sld [smem:[#allocation0]]
  $region30: #{tpu_custom_call.1} parent=0
    _
  %s4 = ssub.s32 1, %s2
  %s5 = scalar_select 0, %s4, %s2
  $region1: #{tpu_custom_call.1} parent=0
    #allocation4 [shape = 'u8[131072]{0}', space=vmem, size = 0x20000, scoped, tag = 'input window, operand 0, single buffered']
    #allocation5 [shape = 's32[1]{0}', space=sflag, size = 0x4, scoped, tag = 'scoped memory for tpu_custom_call.1']
    #allocation6 [shape = 's32[1]{0}', space=sflag, size = 0x4, scoped, tag = 'scoped memory for tpu_custom_call.1']
    #allocation7 [shape = 'u8[512]{0}', space=smem, size = 0x200, scoped, tag = 'output window, operand 0, single buffered']
    %6 = vsyncpa [#allocation5], 0
    %7 = vsyncpa [#allocation6], 0
    // Predicated region
    $region2: #{tpu_custom_call.1} parent=1 // pred_check
      _
    $region3: #{tpu_custom_call.1} parent=1 // pred_check_branch
      %9 = sbr.rel (0) target = $region5
    $region4: #{tpu_custom_call.1} parent=1 // pred_region
      %s11 = ssub.s32 4096, 4096
      %12 = vsyncadd [#allocation5], %s11
      %s13 = sshll.u32 [#allocation4], 4
      %s14 = int_to_ptr.vmem [resolvable:$true] %s13
      %19 = dma.hbm_to_vmem [thread:$0]  %s0, 4096, %s14, [#allocation5], 128, 128, 8
    $region5: #{tpu_custom_call.1} parent=1 // pred_fallthru
      _
    // Predicated region
    $region6: #{tpu_custom_call.1} parent=1 // pred_check
      _
    $region7: #{tpu_custom_call.1} parent=1 // pred_check_branch
      %21 = sbr.rel (0) target = $region9
    $region8: #{tpu_custom_call.1} parent=1 // pred_region
      %22 = dma.done [#allocation5], 4096
    $region9: #{tpu_custom_call.1} parent=1 // pred_fallthru
      _
    %v23 = vld [vmem:[#allocation4] sm:$0xff]
    %v24 = vld [vmem:[#allocation4 + $0x8] sm:$0xff]
    %v25 = vld [vmem:[#allocation4 + $0x10] sm:$0xff]
    %v26 = vld [vmem:[#allocation4 + $0x18] sm:$0xff]
    %v27 = vld [vmem:[#allocation4 + $0x20] sm:$0xff]
    %v28 = vld [vmem:[#allocation4 + $0x28] sm:$0xff]
    %v29 = vld [vmem:[#allocation4 + $0x30] sm:$0xff]
    %v30 = vld [vmem:[#allocation4 + $0x38] sm:$0xff]
    %v31 = vld [vmem:[#allocation4 + $0x40] sm:$0xff]
    %v32 = vld [vmem:[#allocation4 + $0x48] sm:$0xff]
    %v33 = vld [vmem:[#allocation4 + $0x50] sm:$0xff]
    %v34 = vld [vmem:[#allocation4 + $0x58] sm:$0xff]
    %v35 = vld [vmem:[#allocation4 + $0x60] sm:$0xff]
    %v36 = vld [vmem:[#allocation4 + $0x68] sm:$0xff]
    %v37 = vld [vmem:[#allocation4 + $0x70] sm:$0xff]
    %v38 = vld [vmem:[#allocation4 + $0x78] sm:$0xff]
    %v39 = vld [vmem:[#allocation4 + $0x80] sm:$0xff]
    %v40 = vld [vmem:[#allocation4 + $0x88] sm:$0xff]
    %v41 = vld [vmem:[#allocation4 + $0x90] sm:$0xff]
    %v42 = vld [vmem:[#allocation4 + $0x98] sm:$0xff]
    %v43 = vld [vmem:[#allocation4 + $0xa0] sm:$0xff]
    %v44 = vld [vmem:[#allocation4 + $0xa8] sm:$0xff]
    %v45 = vld [vmem:[#allocation4 + $0xb0] sm:$0xff]
    %v46 = vld [vmem:[#allocation4 + $0xb8] sm:$0xff]
    %v47 = vld [vmem:[#allocation4 + $0xc0] sm:$0xff]
    %v48 = vld [vmem:[#allocation4 + $0xc8] sm:$0xff]
    %v49 = vld [vmem:[#allocation4 + $0xd0] sm:$0xff]
    %v50 = vld [vmem:[#allocation4 + $0xd8] sm:$0xff]
    %v51 = vld [vmem:[#allocation4 + $0xe0] sm:$0xff]
    %v52 = vld [vmem:[#allocation4 + $0xe8] sm:$0xff]
    %v53 = vld [vmem:[#allocation4 + $0xf0] sm:$0xff]
    %v54 = vld [vmem:[#allocation4 + $0xf8] sm:$0xff]
    %v55 = vlaneseq
    %v56 = vshrl.u32 %v55, 7
    %v57 = vadd.s32 %v56, 8
    %v58 = vadd.s32 %v56, 16
    %v59 = vadd.s32 %v56, 24
    %v60 = vadd.s32 %v56, 32
    %v61 = vadd.s32 %v56, 40
    %v62 = vadd.s32 %v56, 48
    %v63 = vadd.s32 %v56, 56
    %v64 = vadd.s32 %v56, 64
    %v65 = vadd.s32 %v56, 72
    %v66 = vadd.s32 %v56, 80
    %v67 = vadd.s32 %v56, 88
    %v68 = vadd.s32 %v56, 96
    %v69 = vadd.s32 %v56, 104
    %v70 = vadd.s32 %v56, 112
    %v71 = vadd.s32 %v56, 120
    %v72 = vadd.s32 %v56, 128
    %v73 = vadd.s32 %v56, 136
    %v74 = vadd.s32 %v56, 144
    %v75 = vadd.s32 %v56, 152
    %v76 = vadd.s32 %v56, 160
    %v77 = vadd.s32 %v56, 168
    %v78 = vadd.s32 %v56, 176
    %v79 = vadd.s32 %v56, 184
    %v80 = vadd.s32 %v56, 192
    %v81 = vadd.s32 %v56, 200
    %v82 = vadd.s32 %v56, 208
    %v83 = vadd.s32 %v56, 216
    %v84 = vadd.s32 %v56, 224
    %v85 = vadd.s32 %v56, 232
    %v86 = vadd.s32 %v56, 240
    %v87 = vadd.s32 %v56, 248
    %s88 = smul.u32 0, 256
    %v89 = vstv %s88
    %v90 = vadd.s32 %v56, %v89
    %v91 = vadd.s32 %v57, %v89
    %v92 = vadd.s32 %v58, %v89
    %v93 = vadd.s32 %v59, %v89
    %v94 = vadd.s32 %v60, %v89
    %v95 = vadd.s32 %v61, %v89
    %v96 = vadd.s32 %v62, %v89
    %v97 = vadd.s32 %v63, %v89
    %v98 = vadd.s32 %v64, %v89
    %v99 = vadd.s32 %v65, %v89
    %v100 = vadd.s32 %v66, %v89
    %v101 = vadd.s32 %v67, %v89
    %v102 = vadd.s32 %v68, %v89
    %v103 = vadd.s32 %v69, %v89
    %v104 = vadd.s32 %v70, %v89
    %v105 = vadd.s32 %v71, %v89
    %v106 = vadd.s32 %v72, %v89
    %v107 = vadd.s32 %v73, %v89
    %v108 = vadd.s32 %v74, %v89
    %v109 = vadd.s32 %v75, %v89
    %v110 = vadd.s32 %v76, %v89
    %v111 = vadd.s32 %v77, %v89
    %v112 = vadd.s32 %v78, %v89
    %v113 = vadd.s32 %v79, %v89
    %v114 = vadd.s32 %v80, %v89
    %v115 = vadd.s32 %v81, %v89
    %v116 = vadd.s32 %v82, %v89
    %v117 = vadd.s32 %v83, %v89
    %v118 = vadd.s32 %v84, %v89
    %v119 = vadd.s32 %v85, %v89
    %v120 = vadd.s32 %v86, %v89
    %v121 = vadd.s32 %v87, %v89
    %vm122 = vcmp.ne.f32.partialorder %v23, 0.0
    %vm123 = vcmp.ne.f32.partialorder %v24, 0.0
    %vm124 = vcmp.ne.f32.partialorder %v25, 0.0
    %vm125 = vcmp.ne.f32.partialorder %v26, 0.0
    %vm126 = vcmp.ne.f32.partialorder %v27, 0.0
    %vm127 = vcmp.ne.f32.partialorder %v28, 0.0
    %vm128 = vcmp.ne.f32.partialorder %v29, 0.0
    %vm129 = vcmp.ne.f32.partialorder %v30, 0.0
    %vm130 = vcmp.ne.f32.partialorder %v31, 0.0
    %vm131 = vcmp.ne.f32.partialorder %v32, 0.0
    %vm132 = vcmp.ne.f32.partialorder %v33, 0.0
    %vm133 = vcmp.ne.f32.partialorder %v34, 0.0
    %vm134 = vcmp.ne.f32.partialorder %v35, 0.0
    %vm135 = vcmp.ne.f32.partialorder %v36, 0.0
    %vm136 = vcmp.ne.f32.partialorder %v37, 0.0
    %vm137 = vcmp.ne.f32.partialorder %v38, 0.0
    %vm138 = vcmp.ne.f32.partialorder %v39, 0.0
    %vm139 = vcmp.ne.f32.partialorder %v40, 0.0
    %vm140 = vcmp.ne.f32.partialorder %v41, 0.0
    %vm141 = vcmp.ne.f32.partialorder %v42, 0.0
    %vm142 = vcmp.ne.f32.partialorder %v43, 0.0
    %vm143 = vcmp.ne.f32.partialorder %v44, 0.0
    %vm144 = vcmp.ne.f32.partialorder %v45, 0.0
    %vm145 = vcmp.ne.f32.partialorder %v46, 0.0
    %vm146 = vcmp.ne.f32.partialorder %v47, 0.0
    %vm147 = vcmp.ne.f32.partialorder %v48, 0.0
    %vm148 = vcmp.ne.f32.partialorder %v49, 0.0
    %vm149 = vcmp.ne.f32.partialorder %v50, 0.0
    %vm150 = vcmp.ne.f32.partialorder %v51, 0.0
    %vm151 = vcmp.ne.f32.partialorder %v52, 0.0
    %vm152 = vcmp.ne.f32.partialorder %v53, 0.0
    %vm153 = vcmp.ne.f32.partialorder %v54, 0.0
    %vm154 = vcmp.lt.s32.totalorder %v90, 256
    %vm155 = vcmp.lt.s32.totalorder %v91, 256
    %vm156 = vcmp.lt.s32.totalorder %v92, 256
    %vm157 = vcmp.lt.s32.totalorder %v93, 256
    %vm158 = vcmp.lt.s32.totalorder %v94, 256
    %vm159 = vcmp.lt.s32.totalorder %v95, 256
    %vm160 = vcmp.lt.s32.totalorder %v96, 256
    %vm161 = vcmp.lt.s32.totalorder %v97, 256
    %vm162 = vcmp.lt.s32.totalorder %v98, 256
    %vm163 = vcmp.lt.s32.totalorder %v99, 256
    %vm164 = vcmp.lt.s32.totalorder %v100, 256
    %vm165 = vcmp.lt.s32.totalorder %v101, 256
    %vm166 = vcmp.lt.s32.totalorder %v102, 256
    %vm167 = vcmp.lt.s32.totalorder %v103, 256
    %vm168 = vcmp.lt.s32.totalorder %v104, 256
    %vm169 = vcmp.lt.s32.totalorder %v105, 256
    %vm170 = vcmp.lt.s32.totalorder %v106, 256
    %vm171 = vcmp.lt.s32.totalorder %v107, 256
    %vm172 = vcmp.lt.s32.totalorder %v108, 256
    %vm173 = vcmp.lt.s32.totalorder %v109, 256
    %vm174 = vcmp.lt.s32.totalorder %v110, 256
    %vm175 = vcmp.lt.s32.totalorder %v111, 256
    %vm176 = vcmp.lt.s32.totalorder %v112, 256
    %vm177 = vcmp.lt.s32.totalorder %v113, 256
    %vm178 = vcmp.lt.s32.totalorder %v114, 256
    %vm179 = vcmp.lt.s32.totalorder %v115, 256
    %vm180 = vcmp.lt.s32.totalorder %v116, 256
    %vm181 = vcmp.lt.s32.totalorder %v117, 256
    %vm182 = vcmp.lt.s32.totalorder %v118, 256
    %vm183 = vcmp.lt.s32.totalorder %v119, 256
    %vm184 = vcmp.lt.s32.totalorder %v120, 256
    %vm185 = vcmp.lt.s32.totalorder %v121, 256
    %vm186 = vmand %vm122, %vm154
    %vm187 = vmand %vm123, %vm155
    %vm188 = vmand %vm124, %vm156
    %vm189 = vmand %vm125, %vm157
    %vm190 = vmand %vm126, %vm158
    %vm191 = vmand %vm127, %vm159
    %vm192 = vmand %vm128, %vm160
    %vm193 = vmand %vm129, %vm161
    %vm194 = vmand %vm130, %vm162
    %vm195 = vmand %vm131, %vm163
    %vm196 = vmand %vm132, %vm164
    %vm197 = vmand %vm133, %vm165
    %vm198 = vmand %vm134, %vm166
    %vm199 = vmand %vm135, %vm167
    %vm200 = vmand %vm136, %vm168
    %vm201 = vmand %vm137, %vm169
    %vm202 = vmand %vm138, %vm170
    %vm203 = vmand %vm139, %vm171
    %vm204 = vmand %vm140, %vm172
    %vm205 = vmand %vm141, %vm173
    %vm206 = vmand %vm142, %vm174
    %vm207 = vmand %vm143, %vm175
    %vm208 = vmand %vm144, %vm176
    %vm209 = vmand %vm145, %vm177
    %vm210 = vmand %vm146, %vm178
    %vm211 = vmand %vm147, %vm179
    %vm212 = vmand %vm148, %vm180
    %vm213 = vmand %vm149, %vm181
    %vm214 = vmand %vm150, %vm182
    %vm215 = vmand %vm151, %vm183
    %vm216 = vmand %vm152, %vm184
    %vm217 = vmand %vm153, %vm185
    %v218 = vsel %vm186, %v23, inf
    %v219 = vsel %vm187, %v24, inf
    %v220 = vsel %vm188, %v25, inf
    %v221 = vsel %vm189, %v26, inf
    %v222 = vsel %vm190, %v27, inf
    %v223 = vsel %vm191, %v28, inf
    %v224 = vsel %vm192, %v29, inf
    %v225 = vsel %vm193, %v30, inf
    %v226 = vsel %vm194, %v31, inf
    %v227 = vsel %vm195, %v32, inf
    %v228 = vsel %vm196, %v33, inf
    %v229 = vsel %vm197, %v34, inf
    %v230 = vsel %vm198, %v35, inf
    %v231 = vsel %vm199, %v36, inf
    %v232 = vsel %vm200, %v37, inf
    %v233 = vsel %vm201, %v38, inf
    %v234 = vsel %vm202, %v39, inf
    %v235 = vsel %vm203, %v40, inf
    %v236 = vsel %vm204, %v41, inf
    %v237 = vsel %vm205, %v42, inf
    %v238 = vsel %vm206, %v43, inf
    %v239 = vsel %vm207, %v44, inf
    %v240 = vsel %vm208, %v45, inf
    %v241 = vsel %vm209, %v46, inf
    %v242 = vsel %vm210, %v47, inf
    %v243 = vsel %vm211, %v48, inf
    %v244 = vsel %vm212, %v49, inf
    %v245 = vsel %vm213, %v50, inf
    %v246 = vsel %vm214, %v51, inf
    %v247 = vsel %vm215, %v52, inf
    %v248 = vsel %vm216, %v53, inf
    %v249 = vsel %vm217, %v54, inf
    %v250 = vmin.f32 %v218, %v222
    %v251 = vmin.f32 %v219, %v223
    %v252 = vmin.f32 %v220, %v224
    %v253 = vmin.f32 %v221, %v225
    %v254 = vmin.f32 %v250, %v226
    %v255 = vmin.f32 %v251, %v227
    %v256 = vmin.f32 %v252, %v228
    %v257 = vmin.f32 %v253, %v229
    %v258 = vmin.f32 %v254, %v230
    %v259 = vmin.f32 %v255, %v231
    %v260 = vmin.f32 %v256, %v232
    %v261 = vmin.f32 %v257, %v233
    %v262 = vmin.f32 %v258, %v234
    %v263 = vmin.f32 %v259, %v235
    %v264 = vmin.f32 %v260, %v236
    %v265 = vmin.f32 %v261, %v237
    %v266 = vmin.f32 %v262, %v238
    %v267 = vmin.f32 %v263, %v239
    %v268 = vmin.f32 %v264, %v240
    %v269 = vmin.f32 %v265, %v241
    %v270 = vmin.f32 %v266, %v242
    %v271 = vmin.f32 %v267, %v243
    %v272 = vmin.f32 %v268, %v244
    %v273 = vmin.f32 %v269, %v245
    %v274 = vmin.f32 %v270, %v246
    %v275 = vmin.f32 %v271, %v247
    %v276 = vmin.f32 %v272, %v248
    %v277 = vmin.f32 %v273, %v249
    %v278 = vmin.f32 %v274, %v275
    %v279 = vmin.f32 %v276, %v277
    %v280 = vmin.f32 %v278, %v279
    %v281 = vrot.slane %v280, 4
    %v282 = vmin.f32 %v280, %v281
    %v283 = vrot.slane %v282, 2
    %v284 = vmin.f32 %v282, %v283
    %v285 = vrot.slane %v284, 1
    %v286 = vmin.f32 %v284, %v285
    %v287 = vsel %vm186, %v23, -inf
    %v288 = vsel %vm187, %v24, -inf
    %v289 = vsel %vm188, %v25, -inf
    %v290 = vsel %vm189, %v26, -inf
    %v291 = vsel %vm190, %v27, -inf
    %v292 = vsel %vm191, %v28, -inf
    %v293 = vsel %vm192, %v29, -inf
    %v294 = vsel %vm193, %v30, -inf
    %v295 = vsel %vm194, %v31, -inf
    %v296 = vsel %vm195, %v32, -inf
    %v297 = vsel %vm196, %v33, -inf
    %v298 = vsel %vm197, %v34, -inf
    %v299 = vsel %vm198, %v35, -inf
    %v300 = vsel %vm199, %v36, -inf
    %v301 = vsel %vm200, %v37, -inf
    %v302 = vsel %vm201, %v38, -inf
    %v303 = vsel %vm202, %v39, -inf
    %v304 = vsel %vm203, %v40, -inf
    %v305 = vsel %vm204, %v41, -inf
    %v306 = vsel %vm205, %v42, -inf
    %v307 = vsel %vm206, %v43, -inf
    %v308 = vsel %vm207, %v44, -inf
    %v309 = vsel %vm208, %v45, -inf
    %v310 = vsel %vm209, %v46, -inf
    %v311 = vsel %vm210, %v47, -inf
    %v312 = vsel %vm211, %v48, -inf
    %v313 = vsel %vm212, %v49, -inf
    %v314 = vsel %vm213, %v50, -inf
    %v315 = vsel %vm214, %v51, -inf
    %v316 = vsel %vm215, %v52, -inf
    %v317 = vsel %vm216, %v53, -inf
    %v318 = vsel %vm217, %v54, -inf
    %v319 = vmax.f32 %v287, %v291
    %v320 = vmax.f32 %v288, %v292
    %v321 = vmax.f32 %v289, %v293
    %v322 = vmax.f32 %v290, %v294
    %v323 = vmax.f32 %v319, %v295
    %v324 = vmax.f32 %v320, %v296
    %v325 = vmax.f32 %v321, %v297
    %v326 = vmax.f32 %v322, %v298
    %v327 = vmax.f32 %v323, %v299
    %v328 = vmax.f32 %v324, %v300
    %v329 = vmax.f32 %v325, %v301
    %v330 = vmax.f32 %v326, %v302
    %v331 = vmax.f32 %v327, %v303
    %v332 = vmax.f32 %v328, %v304
    %v333 = vmax.f32 %v329, %v305
    %v334 = vmax.f32 %v330, %v306
    %v335 = vmax.f32 %v331, %v307
    %v336 = vmax.f32 %v332, %v308
    %v337 = vmax.f32 %v333, %v309
    %v338 = vmax.f32 %v334, %v310
    %v339 = vmax.f32 %v335, %v311
    %v340 = vmax.f32 %v336, %v312
    %v341 = vmax.f32 %v337, %v313
    %v342 = vmax.f32 %v338, %v314
    %v343 = vmax.f32 %v339, %v315
    %v344 = vmax.f32 %v340, %v316
    %v345 = vmax.f32 %v341, %v317
    %v346 = vmax.f32 %v342, %v318
    %v347 = vmax.f32 %v343, %v344
    %v348 = vmax.f32 %v345, %v346
    %v349 = vmax.f32 %v347, %v348
    %v350 = vrot.slane %v349, 4
    %v351 = vmax.f32 %v349, %v350
    %v352 = vrot.slane %v351, 2
    %v353 = vmax.f32 %v351, %v352
    %v354 = vrot.slane %v353, 1
    %v355 = vmax.f32 %v353, %v354
    %p356 = scmp.eq.s32.totalorder 0, 0
    // Predicated region
    $region10: #{tpu_custom_call.1} parent=1 // pred_check
      %p357 = pneg %p356
    $region11: #{tpu_custom_call.1} parent=1 // pred_check_branch
      %359 = sbr.rel (%p357) target = $region13
    $region12: #{tpu_custom_call.1} parent=1 // pred_region
      %360 = vst [vmem:[#allocation2] sm:$0x1] %v286
      %361 = vst [vmem:[#allocation3] sm:$0x1] %v355
    $region13: #{tpu_custom_call.1} parent=1 // pred_fallthru
      _
    %p362 = scmp.gt.s32.totalorder 0, 0
    // Predicated region
    $region14: #{tpu_custom_call.1} parent=1 // pred_check
      %p363 = pneg %p362
    $region15: #{tpu_custom_call.1} parent=1 // pred_check_branch
      %365 = sbr.rel (%p363) target = $region17
    $region16: #{tpu_custom_call.1} parent=1 // pred_region
      %v366 = vld [vmem:[#allocation2] sm:$0x1]
      %v367 = vmin.f32 %v366, %v286
      %368 = vst [vmem:[#allocation2] sm:$0x1] %v367
      %v369 = vld [vmem:[#allocation3] sm:$0x1]
      %v370 = vmax.f32 %v369, %v355
      %371 = vst [vmem:[#allocation3] sm:$0x1] %v370
    $region17: #{tpu_custom_call.1} parent=1 // pred_fallthru
      _
    // Predicated region
    $region18: #{tpu_custom_call.1} parent=1 // pred_check
      %p372 = pneg %p356
    $region19: #{tpu_custom_call.1} parent=1 // pred_check_branch
      %374 = sbr.rel (%p372) target = $region21
    $region20: #{tpu_custom_call.1} parent=1 // pred_region
      %v375 = vld [vmem:[#allocation2] sm:$0x1]
      %vm376 = vcmask 1040384
      %v377 = vsel %vm376, %v375, inf
      %378 = vmin.xlane.f32.xlu0 %v377
      %v379 = vpop.xlane.xlu0 %378
      %v380 = vrot.slane %v379, 4
      %v381 = vmin.f32 %v379, %v380
      %v382 = vrot.slane %v381, 2
      %v383 = vmin.f32 %v381, %v382
      %v384 = vrot.slane %v383, 1
      %v385 = vmin.f32 %v383, %v384
      %s386 = vtos %v385
      %s387 = scalar_lea.smem [#allocation7], 0
      %388 = sst [smem:[%s387]] %s386
      %v389 = vld [vmem:[#allocation3] sm:$0x1]
      %v390 = vsel %vm376, %v389, -inf
      %391 = vmax.xlane.f32.xlu0 %v390
      %v392 = vpop.xlane.xlu0 %391
      %v393 = vrot.slane %v392, 4
      %v394 = vmax.f32 %v392, %v393
      %v395 = vrot.slane %v394, 2
      %v396 = vmax.f32 %v394, %v395
      %v397 = vrot.slane %v396, 1
      %v398 = vmax.f32 %v396, %v397
      %s399 = vtos %v398
      %s400 = scalar_lea.smem [#allocation7], 1
      %401 = sst [smem:[%s400]] %s399
    $region21: #{tpu_custom_call.1} parent=1 // pred_fallthru
      _
    // Predicated region
    $region22: #{tpu_custom_call.1} parent=1 // pred_check
      _
    $region23: #{tpu_custom_call.1} parent=1 // pred_check_branch
      %403 = sbr.rel (0) target = $region25
    $region24: #{tpu_custom_call.1} parent=1 // pred_region
      %s405 = ssub.s32 16, 16
      %406 = vsyncadd [#allocation6], %s405
      %409 = dma.smem_to_hbm [#allocation7], 16, %s1, [#allocation6]
    $region25: #{tpu_custom_call.1} parent=1 // pred_fallthru
      _
    // Predicated region
    $region26: #{tpu_custom_call.1} parent=1 // pred_check
      _
    $region27: #{tpu_custom_call.1} parent=1 // pred_check_branch
      %411 = sbr.rel (0) target = $region29
    $region28: #{tpu_custom_call.1} parent=1 // pred_region
      %412 = dma.done [#allocation6], 16
    $region29: #{tpu_custom_call.1} parent=1 // pred_fallthru
      _
    %413 = sfence
    %414 = vsyncpa [#allocation5], 1
    %415 = vsyncpa [#allocation6], 1

</llo_original>
